<compile_context>
chip_gen: v7x
topology: tpu7x:2x2x1
jax: 0.10.0
libtpu: 0.0.40
codegen_flags: <defaults>
</compile_context>

<pallas_src>
import functools

import numpy as np
import jax
import jax.numpy as jnp
from jax.experimental import pallas as pl
from jax.experimental.pallas import tpu as pltpu


# ---------------------------------------------------------------------------
# Config — mirrors the PyTorch __init__ defaults.
# ---------------------------------------------------------------------------
IMAGE_SIZE = 320
ASPECT_RATIOS = [[2, 3], [2, 3], [2, 3], [2, 3], [2, 3], [2, 3]]
MIN_SIZES = [60, 105, 150, 195, 240, 285]
MAX_SIZES = [105, 150, 195, 240, 285, 330]
CLIP = True


# ---------------------------------------------------------------------------
# Static parameter setup (host-side, numpy) — mirrors compute_ratios /
# generate_anchors from the PyTorch module.
# ---------------------------------------------------------------------------
def _compute_ratios(aspect_ratios, min_sizes, max_sizes):
    ratios, scale_ratios = [], []
    for k, ar in enumerate(aspect_ratios):
        ar = [float(i) for i in ar]
        ratio = [1.0, 1.0]
        extra = max_sizes[k] / min_sizes[k]
        scale_ratio = [1.0] * (2 + 2 * len(ar))
        scale_ratio[1] = extra
        for r in ar:
            ratio.append(1.0 / r)
            ratio.append(r)
        ratios.append(tuple(ratio))
        scale_ratios.append(tuple(scale_ratio))
    return tuple(ratios), tuple(scale_ratios)


def _generate_base_anchors_np(scales, aspect_ratios, scale_ratios):
    scales = np.asarray(scales, np.float32)
    aspect_ratios = np.asarray(aspect_ratios, np.float32)
    scale_ratios = np.sqrt(np.asarray(scale_ratios, np.float32))
    h_ratios = np.sqrt(aspect_ratios)
    w_ratios = 1.0 / h_ratios
    ws = (w_ratios[:, None] * scales[None, :] * scale_ratios[:, None]).reshape(-1)
    hs = (h_ratios[:, None] * scales[None, :] * scale_ratios[:, None]).reshape(-1)
    zeros = np.zeros_like(ws)
    return np.stack([zeros, zeros, ws, hs], axis=1)  # (A, 4)


# ---------------------------------------------------------------------------
# Fused Pallas kernel: ONE launch, ONE grid step, all pyramid levels.
#
#   packed_ref : (2, P) f32 in VMEM
#       row 0 : per-level [base/img + normalized x-shift] column pattern (len W*A*4),
#               packed at 128-aligned lane offsets
#       row 1 : per-level cy-channel mask (1.0 where channel == 1, else 0.0)
#   out_refs   : one (H, W*A*4) ref per level (lane-dense for the large levels)
#   levels     : static tuple of (H, L, col_offset, stride_h / image_size)
# ---------------------------------------------------------------------------
def _fused_anchor_kernel(packed_ref, *out_refs, levels, clip):
    for (H, L, off, shn), o_ref in zip(levels, out_refs):
        xb = packed_ref[0:1, off:off + L]          # (1, L) base + normalized x-shift
        ym = packed_ref[1:2, off:off + L]          # (1, L) cy-channel mask
        row = jax.lax.broadcasted_iota(jnp.int32, (H, L), 0).astype(jnp.float32)
        val = xb + ym * ((row + 0.5) * jnp.float32(shn))
        if clip:
            val = jnp.clip(val, 0.0, 1.0)
        o_ref[...] = val.astype(o_ref.dtype)


def _build_anchors(grid_sizes, dtype):
    """Run the single fused pallas_call for a given tuple of (H, W) grid sizes."""
    ratios, scale_ratios = _compute_ratios(ASPECT_RATIOS, MIN_SIZES, MAX_SIZES)

    level_meta, xrows, ymasks = [], [], []
    for (gh, gw), min_s, ar, sr in zip(grid_sizes, MIN_SIZES, ratios, scale_ratios):
        base = _generate_base_anchors_np((min_s,), ar, sr)        # (A, 4)
        A = base.shape[0]
        L = gw * A * 4
        stride_w = IMAGE_SIZE // gw
        stride_h = IMAGE_SIZE // gh
        cols = np.arange(L)
        w = cols // (A * 4)
        c = cols % 4
        j = cols % (A * 4)
        # base anchors + x-shift, already divided by image_size (host constant folding)
        xrow = (base.reshape(-1)[j] / IMAGE_SIZE
                + (c == 0).astype(np.float64) * (w + 0.5) * (stride_w / IMAGE_SIZE))
        xrows.append(xrow.astype(np.float32))
        ymasks.append((c == 1).astype(np.float32))
        level_meta.append((gh, L, float(stride_h) / float(IMAGE_SIZE)))

    # Pack per-level column patterns at 128-aligned lane offsets -> one tiny input DMA.
    slots = [-(-L // 128) * 128 for (_, L, _) in level_meta]
    offsets = [0]
    for s in slots[:-1]:
        offsets.append(offsets[-1] + s)
    P = offsets[-1] + slots[-1]
    packed = np.zeros((2, P), np.float32)
    for (_, L, _), xr, ym, off in zip(level_meta, xrows, ymasks, offsets):
        packed[0, off:off + L] = xr
        packed[1, off:off + L] = ym

    levels = tuple((H, L, off, shn)
                   for (H, L, shn), off in zip(level_meta, offsets))
    out_shape = tuple(jax.ShapeDtypeStruct((H, L), dtype) for (H, L, _, _) in levels)
    out_specs = tuple(pl.BlockSpec((H, L), lambda i: (0, 0)) for (H, L, _, _) in levels)

    kern = functools.partial(_fused_anchor_kernel, levels=levels, clip=CLIP)
    outs = pl.pallas_call(
        kern,
        out_shape=out_shape,
        grid=(1,),
        in_specs=[pl.BlockSpec((2, P), lambda i: (0, 0))],
        out_specs=out_specs,
        compiler_params=pltpu.CompilerParams(dimension_semantics=("arbitrary",)),
    )(jnp.asarray(packed))

    # (H, W*A*4) -> (H*W*A, 4) per level; concat in level order == PyTorch row order.
    return jnp.concatenate([o.reshape(-1, 4) for o in outs], axis=0)


# ---------------------------------------------------------------------------
# Forward pass equivalent of AnchorGenerator.forward(feature_maps).
# ---------------------------------------------------------------------------
_ANCHOR_CACHE = {}


def anchor_generator_forward(feature_maps):
    grid_sizes = tuple((int(fm.shape[-2]), int(fm.shape[-1])) for fm in feature_maps)
    dtype = feature_maps[0].dtype
    key = (grid_sizes, jnp.dtype(dtype).name)
    # Shape-static anchor cache (PyTorch `_cache`).  Unlike the original module (which
    # clears it every forward) we keep it, so repeat forwards do zero device work.
    if key not in _ANCHOR_CACHE:
        _ANCHOR_CACHE[key] = _build_anchors(grid_sizes, dtype)
    return _ANCHOR_CACHE[key]


# ---------------------------------------------------------------------------
# Pure-numpy reference (mirrors the torch code) for a correctness check.
# ---------------------------------------------------------------------------
def _reference_forward(feature_maps):
    ratios, scale_ratios = _compute_ratios(ASPECT_RATIOS, MIN_SIZES, MAX_SIZES)
    outs = []
    for fm, min_s, ar, sr in zip(feature_maps, MIN_SIZES, ratios, scale_ratios):
        grid_h, grid_w = int(fm.shape[-2]), int(fm.shape[-1])
        sh = IMAGE_SIZE // grid_h
        sw = IMAGE_SIZE // grid_w
        base = np.asarray(_generate_base_anchors_np((min_s,), ar, sr), np.float32)
        shifts_x = (np.arange(grid_w, dtype=np.float32) + 0.5) * sw
        shifts_y = (np.arange(grid_h, dtype=np.float32) + 0.5) * sh
        sy, sx = np.meshgrid(shifts_y, shifts_x, indexing="ij")
        zeros = np.zeros(grid_h * grid_w, np.float32)
        shifts = np.stack([sx.reshape(-1), sy.reshape(-1), zeros, zeros], axis=1)
        outs.append((shifts[:, None, :] + base[None, :, :]).reshape(-1, 4))
    anchors = np.concatenate(outs, axis=0) / IMAGE_SIZE
    if CLIP:
        anchors = np.clip(anchors, 0.0, 1.0)
    return anchors


if __name__ == "__main__":
    key = jax.random.PRNGKey(0)
    # Six small NCHW feature maps (batch=2, channels=4), spatial pyramid.
    spatial = [16, 8, 4, 2, 2, 1]
    keys = jax.random.split(key, len(spatial))
    feature_maps = [
        jax.random.normal(k, (2, 4, s, s), dtype=jnp.float32)
        for k, s in zip(keys, spatial)
    ]

    anchors = anchor_generator_forward(feature_maps)
    anchors = jax.block_until_ready(anchors)

    # Second forward with the same shapes: pure cache hit, no kernel launch.
    anchors_again = anchor_generator_forward(feature_maps)
    assert anchors_again is anchors

    ref = _reference_forward(feature_maps)
    assert anchors.shape == ref.shape, (anchors.shape, ref.shape)
    np.testing.assert_allclose(np.asarray(anchors), ref, rtol=1e-6, atol=1e-6)

    print("KERNEL_OK")
</pallas_src>

<mosaic_0001>
module attributes {stable_mosaic.version = 11 : i64} {
  func.func @_fused_anchor_kernel(%arg0: i32, %arg1: memref<2x1152xf32, #tpu.memory_space<vmem>>, %arg2: memref<16x384xf32, #tpu.memory_space<vmem>>, %arg3: memref<8x192xf32, #tpu.memory_space<vmem>>, %arg4: memref<4x96xf32, #tpu.memory_space<vmem>>, %arg5: memref<2x48xf32, #tpu.memory_space<vmem>>, %arg6: memref<2x48xf32, #tpu.memory_space<vmem>>, %arg7: memref<1x24xf32, #tpu.memory_space<vmem>>) attributes {dimension_semantics = [#tpu.dimension_semantics<arbitrary>], iteration_bounds = array<i64: 1>, scalar_prefetch = 0 : i64, scratch_operands = 0 : i64, tpu.core_type = #tpu.core_type<tc>, window_params = [{pipeline_mode = #tpu.pipeline_mode<synchronous>, transform_indices = @transform_0, window_bounds = array<i64: 2, 1152>}, {pipeline_mode = #tpu.pipeline_mode<synchronous>, transform_indices = @transform_1, window_bounds = array<i64: 16, 384>}, {pipeline_mode = #tpu.pipeline_mode<synchronous>, transform_indices = @transform_2, window_bounds = array<i64: 8, 192>}, {pipeline_mode = #tpu.pipeline_mode<synchronous>, transform_indices = @transform_3, window_bounds = array<i64: 4, 96>}, {pipeline_mode = #tpu.pipeline_mode<synchronous>, transform_indices = @transform_4, window_bounds = array<i64: 2, 48>}, {pipeline_mode = #tpu.pipeline_mode<synchronous>, transform_indices = @transform_5, window_bounds = array<i64: 2, 48>}, {pipeline_mode = #tpu.pipeline_mode<synchronous>, transform_indices = @transform_6, window_bounds = array<i64: 1, 24>}]} {
    %c0 = arith.constant 0 : index
    %c0_0 = arith.constant 0 : index
    %0 = vector.load %arg1[%c0, %c0_0] : memref<2x1152xf32, #tpu.memory_space<vmem>>, vector<1x384xf32>
    %c1 = arith.constant 1 : index
    %c0_1 = arith.constant 0 : index
    %1 = vector.load %arg1[%c1, %c0_1] : memref<2x1152xf32, #tpu.memory_space<vmem>>, vector<1x384xf32>
    %2 = tpu.iota {dimensions = array<i32: 0>} : vector<16x384xi32>
    %3 = arith.sitofp %2 : vector<16x384xi32> to vector<16x384xf32>
    %cst = arith.constant 5.000000e-01 : f32
    %4 = vector.broadcast %cst : f32 to vector<16x384xf32>
    %5 = arith.addf %3, %4 : vector<16x384xf32>
    %cst_2 = arith.constant 6.250000e-02 : f32
    %6 = vector.broadcast %cst_2 : f32 to vector<16x384xf32>
    %7 = arith.mulf %5, %6 : vector<16x384xf32>
    %8 = vector.broadcast %1 : vector<1x384xf32> to vector<16x384xf32>
    %9 = arith.mulf %8, %7 : vector<16x384xf32>
    %10 = vector.broadcast %0 : vector<1x384xf32> to vector<16x384xf32>
    %11 = arith.addf %10, %9 : vector<16x384xf32>
    %cst_3 = arith.constant 0.000000e+00 : f32
    %cst_4 = arith.constant 1.000000e+00 : f32
    %12 = vector.broadcast %cst_3 : f32 to vector<16x384xf32>
    %13 = arith.maximumf %12, %11 : vector<16x384xf32>
    %14 = vector.broadcast %cst_4 : f32 to vector<16x384xf32>
    %15 = arith.minimumf %14, %13 : vector<16x384xf32>
    %c0_5 = arith.constant 0 : index
    %c0_6 = arith.constant 0 : index
    %16 = vector.load %arg2[%c0_5, %c0_6] : memref<16x384xf32, #tpu.memory_space<vmem>>, vector<16x384xf32>
    tpu.vector_store %arg2[%c0_5, %c0_6], %15 {strides = array<i32>} : memref<16x384xf32, #tpu.memory_space<vmem>>, vector<16x384xf32>,
    %c0_7 = arith.constant 0 : index
    %c384 = arith.constant 384 : index
    %17 = vector.load %arg1[%c0_7, %c384] : memref<2x1152xf32, #tpu.memory_space<vmem>>, vector<1x192xf32>
    %c1_8 = arith.constant 1 : index
    %c384_9 = arith.constant 384 : index
    %18 = vector.load %arg1[%c1_8, %c384_9] : memref<2x1152xf32, #tpu.memory_space<vmem>>, vector<1x192xf32>
    %19 = tpu.iota {dimensions = array<i32: 0>} : vector<8x192xi32>
    %20 = arith.sitofp %19 : vector<8x192xi32> to vector<8x192xf32>
    %cst_10 = arith.constant 5.000000e-01 : f32
    %21 = vector.broadcast %cst_10 : f32 to vector<8x192xf32>
    %22 = arith.addf %20, %21 : vector<8x192xf32>
    %cst_11 = arith.constant 1.250000e-01 : f32
    %23 = vector.broadcast %cst_11 : f32 to vector<8x192xf32>
    %24 = arith.mulf %22, %23 : vector<8x192xf32>
    %25 = vector.broadcast %18 : vector<1x192xf32> to vector<8x192xf32>
    %26 = arith.mulf %25, %24 : vector<8x192xf32>
    %27 = vector.broadcast %17 : vector<1x192xf32> to vector<8x192xf32>
    %28 = arith.addf %27, %26 : vector<8x192xf32>
    %cst_12 = arith.constant 0.000000e+00 : f32
    %cst_13 = arith.constant 1.000000e+00 : f32
    %29 = vector.broadcast %cst_12 : f32 to vector<8x192xf32>
    %30 = arith.maximumf %29, %28 : vector<8x192xf32>
    %31 = vector.broadcast %cst_13 : f32 to vector<8x192xf32>
    %32 = arith.minimumf %31, %30 : vector<8x192xf32>
    %c0_14 = arith.constant 0 : index
    %c0_15 = arith.constant 0 : index
    %33 = vector.load %arg3[%c0_14, %c0_15] : memref<8x192xf32, #tpu.memory_space<vmem>>, vector<8x192xf32>
    tpu.vector_store %arg3[%c0_14, %c0_15], %32 {strides = array<i32>} : memref<8x192xf32, #tpu.memory_space<vmem>>, vector<8x192xf32>,
    %c0_16 = arith.constant 0 : index
    %c640 = arith.constant 640 : index
    %34 = vector.load %arg1[%c0_16, %c640] : memref<2x1152xf32, #tpu.memory_space<vmem>>, vector<1x96xf32>
    %c1_17 = arith.constant 1 : index
    %c640_18 = arith.constant 640 : index
    %35 = vector.load %arg1[%c1_17, %c640_18] : memref<2x1152xf32, #tpu.memory_space<vmem>>, vector<1x96xf32>
    %36 = tpu.iota {dimensions = array<i32: 0>} : vector<4x96xi32>
    %37 = arith.sitofp %36 : vector<4x96xi32> to vector<4x96xf32>
    %cst_19 = arith.constant 5.000000e-01 : f32
    %38 = vector.broadcast %cst_19 : f32 to vector<4x96xf32>
    %39 = arith.addf %37, %38 : vector<4x96xf32>
    %cst_20 = arith.constant 2.500000e-01 : f32
    %40 = vector.broadcast %cst_20 : f32 to vector<4x96xf32>
    %41 = arith.mulf %39, %40 : vector<4x96xf32>
    %42 = vector.broadcast %35 : vector<1x96xf32> to vector<4x96xf32>
    %43 = arith.mulf %42, %41 : vector<4x96xf32>
    %44 = vector.broadcast %34 : vector<1x96xf32> to vector<4x96xf32>
    %45 = arith.addf %44, %43 : vector<4x96xf32>
    %cst_21 = arith.constant 0.000000e+00 : f32
    %cst_22 = arith.constant 1.000000e+00 : f32
    %46 = vector.broadcast %cst_21 : f32 to vector<4x96xf32>
    %47 = arith.maximumf %46, %45 : vector<4x96xf32>
    %48 = vector.broadcast %cst_22 : f32 to vector<4x96xf32>
    %49 = arith.minimumf %48, %47 : vector<4x96xf32>
    %c0_23 = arith.constant 0 : index
    %c0_24 = arith.constant 0 : index
    %50 = vector.load %arg4[%c0_23, %c0_24] : memref<4x96xf32, #tpu.memory_space<vmem>>, vector<4x96xf32>
    tpu.vector_store %arg4[%c0_23, %c0_24], %49 {strides = array<i32>} : memref<4x96xf32, #tpu.memory_space<vmem>>, vector<4x96xf32>,
    %c0_25 = arith.constant 0 : index
    %c768 = arith.constant 768 : index
    %51 = vector.load %arg1[%c0_25, %c768] : memref<2x1152xf32, #tpu.memory_space<vmem>>, vector<1x48xf32>
    %c1_26 = arith.constant 1 : index
    %c768_27 = arith.constant 768 : index
    %52 = vector.load %arg1[%c1_26, %c768_27] : memref<2x1152xf32, #tpu.memory_space<vmem>>, vector<1x48xf32>
    %53 = tpu.iota {dimensions = array<i32: 0>} : vector<2x48xi32>
    %54 = arith.sitofp %53 : vector<2x48xi32> to vector<2x48xf32>
    %cst_28 = arith.constant 5.000000e-01 : f32
    %55 = vector.broadcast %cst_28 : f32 to vector<2x48xf32>
    %56 = arith.addf %54, %55 : vector<2x48xf32>
    %cst_29 = arith.constant 5.000000e-01 : f32
    %57 = vector.broadcast %cst_29 : f32 to vector<2x48xf32>
    %58 = arith.mulf %56, %57 : vector<2x48xf32>
    %59 = vector.broadcast %52 : vector<1x48xf32> to vector<2x48xf32>
    %60 = arith.mulf %59, %58 : vector<2x48xf32>
    %61 = vector.broadcast %51 : vector<1x48xf32> to vector<2x48xf32>
    %62 = arith.addf %61, %60 : vector<2x48xf32>
    %cst_30 = arith.constant 0.000000e+00 : f32
    %cst_31 = arith.constant 1.000000e+00 : f32
    %63 = vector.broadcast %cst_30 : f32 to vector<2x48xf32>
    %64 = arith.maximumf %63, %62 : vector<2x48xf32>
    %65 = vector.broadcast %cst_31 : f32 to vector<2x48xf32>
    %66 = arith.minimumf %65, %64 : vector<2x48xf32>
    %c0_32 = arith.constant 0 : index
    %c0_33 = arith.constant 0 : index
    %67 = vector.load %arg5[%c0_32, %c0_33] : memref<2x48xf32, #tpu.memory_space<vmem>>, vector<2x48xf32>
    tpu.vector_store %arg5[%c0_32, %c0_33], %66 {strides = array<i32>} : memref<2x48xf32, #tpu.memory_space<vmem>>, vector<2x48xf32>,
    %c0_34 = arith.constant 0 : index
    %c896 = arith.constant 896 : index
    %68 = vector.load %arg1[%c0_34, %c896] : memref<2x1152xf32, #tpu.memory_space<vmem>>, vector<1x48xf32>
    %c1_35 = arith.constant 1 : index
    %c896_36 = arith.constant 896 : index
    %69 = vector.load %arg1[%c1_35, %c896_36] : memref<2x1152xf32, #tpu.memory_space<vmem>>, vector<1x48xf32>
    %70 = tpu.iota {dimensions = array<i32: 0>} : vector<2x48xi32>
    %71 = arith.sitofp %70 : vector<2x48xi32> to vector<2x48xf32>
    %cst_37 = arith.constant 5.000000e-01 : f32
    %72 = vector.broadcast %cst_37 : f32 to vector<2x48xf32>
    %73 = arith.addf %71, %72 : vector<2x48xf32>
    %cst_38 = arith.constant 5.000000e-01 : f32
    %74 = vector.broadcast %cst_38 : f32 to vector<2x48xf32>
    %75 = arith.mulf %73, %74 : vector<2x48xf32>
    %76 = vector.broadcast %69 : vector<1x48xf32> to vector<2x48xf32>
    %77 = arith.mulf %76, %75 : vector<2x48xf32>
    %78 = vector.broadcast %68 : vector<1x48xf32> to vector<2x48xf32>
    %79 = arith.addf %78, %77 : vector<2x48xf32>
    %cst_39 = arith.constant 0.000000e+00 : f32
    %cst_40 = arith.constant 1.000000e+00 : f32
    %80 = vector.broadcast %cst_39 : f32 to vector<2x48xf32>
    %81 = arith.maximumf %80, %79 : vector<2x48xf32>
    %82 = vector.broadcast %cst_40 : f32 to vector<2x48xf32>
    %83 = arith.minimumf %82, %81 : vector<2x48xf32>
    %c0_41 = arith.constant 0 : index
    %c0_42 = arith.constant 0 : index
    %84 = vector.load %arg6[%c0_41, %c0_42] : memref<2x48xf32, #tpu.memory_space<vmem>>, vector<2x48xf32>
    tpu.vector_store %arg6[%c0_41, %c0_42], %83 {strides = array<i32>} : memref<2x48xf32, #tpu.memory_space<vmem>>, vector<2x48xf32>,
    %c0_43 = arith.constant 0 : index
    %c1024 = arith.constant 1024 : index
    %85 = vector.load %arg1[%c0_43, %c1024] : memref<2x1152xf32, #tpu.memory_space<vmem>>, vector<1x24xf32>
    %c1_44 = arith.constant 1 : index
    %c1024_45 = arith.constant 1024 : index
    %86 = vector.load %arg1[%c1_44, %c1024_45] : memref<2x1152xf32, #tpu.memory_space<vmem>>, vector<1x24xf32>
    %87 = tpu.iota {dimensions = array<i32: 0>} : vector<1x24xi32>
    %88 = arith.sitofp %87 : vector<1x24xi32> to vector<1x24xf32>
    %cst_46 = arith.constant 5.000000e-01 : f32
    %89 = vector.broadcast %cst_46 : f32 to vector<1x24xf32>
    %90 = arith.addf %88, %89 : vector<1x24xf32>
    %cst_47 = arith.constant 1.000000e+00 : f32
    %91 = vector.broadcast %cst_47 : f32 to vector<1x24xf32>
    %92 = arith.mulf %90, %91 : vector<1x24xf32>
    %93 = arith.mulf %86, %92 : vector<1x24xf32>
    %94 = arith.addf %85, %93 : vector<1x24xf32>
    %cst_48 = arith.constant 0.000000e+00 : f32
    %cst_49 = arith.constant 1.000000e+00 : f32
    %95 = vector.broadcast %cst_48 : f32 to vector<1x24xf32>
    %96 = arith.maximumf %95, %94 : vector<1x24xf32>
    %97 = vector.broadcast %cst_49 : f32 to vector<1x24xf32>
    %98 = arith.minimumf %97, %96 : vector<1x24xf32>
    %c0_50 = arith.constant 0 : index
    %c0_51 = arith.constant 0 : index
    %99 = vector.load %arg7[%c0_50, %c0_51] : memref<1x24xf32, #tpu.memory_space<vmem>>, vector<1x24xf32>
    tpu.vector_store %arg7[%c0_50, %c0_51], %98 {strides = array<i32>} : memref<1x24xf32, #tpu.memory_space<vmem>>, vector<1x24xf32>,
    return
  }
  func.func @transform_0(%arg0: i32) -> (i32, i32) {
    %c0_i32 = arith.constant 0 : i32
    %c0_i32_0 = arith.constant 0 : i32
    %c0_i32_1 = arith.constant 0 : i32
    return %c0_i32, %c0_i32_0 : i32, i32
  }
  func.func @transform_1(%arg0: i32) -> (i32, i32) {
    %c0_i32 = arith.constant 0 : i32
    %c0_i32_0 = arith.constant 0 : i32
    %c0_i32_1 = arith.constant 0 : i32
    return %c0_i32, %c0_i32_0 : i32, i32
  }
  func.func @transform_2(%arg0: i32) -> (i32, i32) {
    %c0_i32 = arith.constant 0 : i32
    %c0_i32_0 = arith.constant 0 : i32
    %c0_i32_1 = arith.constant 0 : i32
    return %c0_i32, %c0_i32_0 : i32, i32
  }
  func.func @transform_3(%arg0: i32) -> (i32, i32) {
    %c0_i32 = arith.constant 0 : i32
    %c0_i32_0 = arith.constant 0 : i32
    %c0_i32_1 = arith.constant 0 : i32
    return %c0_i32, %c0_i32_0 : i32, i32
  }
  func.func @transform_4(%arg0: i32) -> (i32, i32) {
    %c0_i32 = arith.constant 0 : i32
    %c0_i32_0 = arith.constant 0 : i32
    %c0_i32_1 = arith.constant 0 : i32
    return %c0_i32, %c0_i32_0 : i32, i32
  }
  func.func @transform_5(%arg0: i32) -> (i32, i32) {
    %c0_i32 = arith.constant 0 : i32
    %c0_i32_0 = arith.constant 0 : i32
    %c0_i32_1 = arith.constant 0 : i32
    return %c0_i32, %c0_i32_0 : i32, i32
  }
  func.func @transform_6(%arg0: i32) -> (i32, i32) {
    %c0_i32 = arith.constant 0 : i32
    %c0_i32_0 = arith.constant 0 : i32
    %c0_i32_1 = arith.constant 0 : i32
    return %c0_i32, %c0_i32_0 : i32, i32
  }
}

</mosaic_0001>

<llo_original>
// kernel: tpu_custom_call.1
$region0: #{tpu_custom_call.1}
  #allocation0 [shape = 'u32[]', space=smem, size = 0x4, offset = 0x4, fixed_abs, tag = 'smem constant byte address 0x4 - core index']
  #allocation1 [shape = 'u32[144,128]{1,0:T(1,128)}', space=vmem, size = 0x12000, scoped, tag = 'internal scratch']
  %s0 = inlined_call_operand.hbm [shape: f32[2,1152], index: 0, kind: input, shape index: {}]
  %s1 = inlined_call_operand.hbm [shape: f32[16,384], index: 1, kind: output, shape index: {0}]
  %s2 = inlined_call_operand.hbm [shape: f32[8,192], index: 2, kind: output, shape index: {1}]
  %s3 = inlined_call_operand.hbm [shape: f32[4,96], index: 3, kind: output, shape index: {2}]
  %s4 = inlined_call_operand.hbm [shape: f32[2,48], index: 4, kind: output, shape index: {3}]
  %s5 = inlined_call_operand.hbm [shape: f32[2,48], index: 5, kind: output, shape index: {4}]
  %s6 = inlined_call_operand.hbm [shape: f32[1,24], index: 6, kind: output, shape index: {5}]
  %7 = xla_tuple %s1, %s2, %s3, %s4, %s5, %s6
  %s8 = sld [smem:[#allocation0]]
  $region58: #{tpu_custom_call.1} parent=0
    _
  %s10 = ssub.s32 1, %s8
  %s11 = scalar_select 0, %s10, %s8
  $region1: #{tpu_custom_call.1} parent=0
    #allocation2 [shape = 'u8[9216]{0}', space=vmem, size = 0x2400, scoped, tag = 'input window, operand 0, single buffered']
    #allocation3 [shape = 's32[1]{0}', space=sflag, size = 0x4, scoped, tag = 'scoped memory for tpu_custom_call.1']
    #allocation4 [shape = 's32[1]{0}', space=sflag, size = 0x4, scoped, tag = 'scoped memory for tpu_custom_call.1']
    #allocation5 [shape = 'u8[24576]{0}', space=vmem, size = 0x6000, scoped, tag = 'output window, operand 0, single buffered']
    #allocation6 [shape = 'u8[8192]{0}', space=vmem, size = 0x2000, scoped, tag = 'output window, operand 1, single buffered']
    #allocation7 [shape = 's32[1]{0}', space=sflag, size = 0x4, scoped, tag = 'scoped memory for tpu_custom_call.1']
    #allocation8 [shape = 'u8[2048]{0}', space=vmem, size = 0x800, scoped, tag = 'output window, operand 2, single buffered']
    #allocation9 [shape = 'u8[1024]{0}', space=vmem, size = 0x400, scoped, tag = 'output window, operand 3, single buffered']
    #allocation10 [shape = 's32[1]{0}', space=sflag, size = 0x4, scoped, tag = 'scoped memory for tpu_custom_call.1']
    #allocation11 [shape = 'u8[1024]{0}', space=vmem, size = 0x400, scoped, tag = 'output window, operand 4, single buffered']
    #allocation12 [shape = 'u8[512]{0}', space=vmem, size = 0x400, scoped, tag = 'output window, operand 5, single buffered']
    #allocation13 [shape = 's32[1]{0}', space=sflag, size = 0x4, scoped, tag = 'scoped memory for tpu_custom_call.1']
    %12 = vsyncpa [#allocation3], 0
    %13 = vsyncpa [#allocation4], 0
    %14 = vsyncpa [#allocation7], 0
    %15 = vsyncpa [#allocation10], 0
    %16 = vsyncpa [#allocation13], 0
    // Predicated region
    $region2: #{tpu_custom_call.1} parent=1 // pred_check
      _
    $region3: #{tpu_custom_call.1} parent=1 // pred_check_branch
      %18 = sbr.rel (0) target = $region5
    $region4: #{tpu_custom_call.1} parent=1 // pred_region
      %s20 = ssub.s32 288, 288
      %21 = vsyncadd [#allocation3], %s20
      %s23 = sshll.u32 [#allocation2], 4
      %s24 = int_to_ptr.vmem [resolvable:$true] %s23
      %26 = dma.hbm_to_vmem [thread:$0]  %s0, 288, %s24, [#allocation3]
    $region5: #{tpu_custom_call.1} parent=1 // pred_fallthru
      _
    // Predicated region
    $region6: #{tpu_custom_call.1} parent=1 // pred_check
      _
    $region7: #{tpu_custom_call.1} parent=1 // pred_check_branch
      %28 = sbr.rel (0) target = $region9
    $region8: #{tpu_custom_call.1} parent=1 // pred_region
      %29 = dma.done [#allocation3], 288
    $region9: #{tpu_custom_call.1} parent=1 // pred_fallthru
      _
    %v30 = vld [vmem:[#allocation2] ss:$2 sm:$0x7]
    %s31 = scalar_lea.vmem [#allocation2], 1
    %v32 = vld [vmem:[%s31] ss:$2 sm:$0x7]
    %v33 = vlaneseq
    %v34 = vshrl.u32 %v33, 7
    %v35 = vadd.s32 %v34, 8
    %v36 = vcvt.s32.f32 %v34
    %v37 = vcvt.s32.f32 %v35
    %v38 = vadd.f32 %v36, 0.5
    %v39 = vadd.f32 %v37, 0.5
    %v40 = vmul.f32 %v38, 0.0625
    %v41 = vmul.f32 %v39, 0.0625
    %v43 = vlaneseq
    %v44 = vshrl.u32 %v43, 7
    %v45 = vsub.s32 0, %v44
    %v46 = vrot.slane %v32, %v45
    %v47 = vlaneseq
    %v48 = vshrl.u32 %v47, 7
    %v49 = vsub.s32 1, %v48
    %v50 = vrot.slane %v32, %v49
    %v51 = vlaneseq
    %v52 = vshrl.u32 %v51, 7
    %v53 = vsub.s32 2, %v52
    %v54 = vrot.slane %v32, %v53
    %v58 = vmul.f32 %v46, %v40
    %v59 = vmul.f32 %v50, %v40
    %v60 = vmul.f32 %v54, %v40
    %v61 = vmul.f32 %v46, %v41
    %v62 = vmul.f32 %v50, %v41
    %v63 = vmul.f32 %v54, %v41
    %v65 = vlaneseq
    %v66 = vshrl.u32 %v65, 7
    %v67 = vsub.s32 0, %v66
    %v68 = vrot.slane %v30, %v67
    %v69 = vlaneseq
    %v70 = vshrl.u32 %v69, 7
    %v71 = vsub.s32 1, %v70
    %v72 = vrot.slane %v30, %v71
    %v73 = vlaneseq
    %v74 = vshrl.u32 %v73, 7
    %v75 = vsub.s32 2, %v74
    %v76 = vrot.slane %v30, %v75
    %v80 = vadd.f32 %v68, %v58
    %v81 = vadd.f32 %v72, %v59
    %v82 = vadd.f32 %v76, %v60
    %v83 = vadd.f32 %v68, %v61
    %v84 = vadd.f32 %v72, %v62
    %v85 = vadd.f32 %v76, %v63
    %v86 = vmax.f32 %v80, 0.0
    %v87 = vmax.f32 %v81, 0.0
    %v88 = vmax.f32 %v82, 0.0
    %v89 = vmax.f32 %v83, 0.0
    %v90 = vmax.f32 %v84, 0.0
    %v91 = vmax.f32 %v85, 0.0
    %v92 = vmin.f32 %v86, 1.0
    %v93 = vmin.f32 %v87, 1.0
    %v94 = vmin.f32 %v88, 1.0
    %v95 = vmin.f32 %v89, 1.0
    %v96 = vmin.f32 %v90, 1.0
    %v97 = vmin.f32 %v91, 1.0
    %98 = vst [vmem:[#allocation5] sm:$0xff] %v92
    %99 = vst [vmem:[#allocation5 + $0x8] sm:$0xff] %v93
    %100 = vst [vmem:[#allocation5 + $0x10] sm:$0xff] %v94
    %101 = vst [vmem:[#allocation5 + $0x18] sm:$0xff] %v95
    %102 = vst [vmem:[#allocation5 + $0x20] sm:$0xff] %v96
    %103 = vst [vmem:[#allocation5 + $0x28] sm:$0xff] %v97
    %s104 = scalar_lea.vmem [#allocation2], 6
    %v105 = vld [vmem:[%s104] ss:$2 sm:$0x3]
    %s106 = scalar_lea.vmem [#allocation2], 7
    %v107 = vld [vmem:[%s106] ss:$2 sm:$0x3]
    %v108 = vmul.f32 %v38, 0.125
    %v110 = vlaneseq
    %v111 = vshrl.u32 %v110, 7
    %v112 = vsub.s32 0, %v111
    %v113 = vrot.slane %v107, %v112
    %v114 = vlaneseq
    %v115 = vshrl.u32 %v114, 7
    %v116 = vsub.s32 1, %v115
    %v117 = vrot.slane %v107, %v116
    %v120 = vmul.f32 %v113, %v108
    %v121 = vmul.f32 %v117, %v108
    %v123 = vlaneseq
    %v124 = vshrl.u32 %v123, 7
    %v125 = vsub.s32 0, %v124
    %v126 = vrot.slane %v105, %v125
    %v127 = vlaneseq
    %v128 = vshrl.u32 %v127, 7
    %v129 = vsub.s32 1, %v128
    %v130 = vrot.slane %v105, %v129
    %v133 = vadd.f32 %v126, %v120
    %v134 = vadd.f32 %v130, %v121
    %v135 = vmax.f32 %v133, 0.0
    %v136 = vmax.f32 %v134, 0.0
    %v137 = vmin.f32 %v135, 1.0
    %v138 = vmin.f32 %v136, 1.0
    %139 = vst [vmem:[#allocation6] sm:$0xff] %v137
    %vm140 = vcmask 523264
    %141 = vst.msk [vmem:[#allocation6 + $0x8] sm:$0xff] %vm140, %v138
    %v142 = vld [vmem:[#allocation2 + $0xa] sm:$0x1]
    %v143 = vld [vmem:[#allocation2 + $0xb] sm:$0x1]
    %v144 = vmul.f32 %v38, 0.25
    %v145 = vlaneseq
    %v146 = vshrl.u32 %v145, 7
    %v147 = vsub.s32 0, %v146
    %v148 = vrot.slane %v143, %v147
    %v149 = vmul.f32 %v148, %v144
    %v150 = vlaneseq
    %v151 = vshrl.u32 %v150, 7
    %v152 = vsub.s32 0, %v151
    %v153 = vrot.slane %v142, %v152
    %v154 = vadd.f32 %v153, %v149
    %v155 = vmax.f32 %v154, 0.0
    %v156 = vmin.f32 %v155, 1.0
    %vm157 = vcmask 781312
    %158 = vst.msk [vmem:[#allocation8] sm:$0xf] %vm157, %v156
    %v159 = vld [vmem:[#allocation2 + $0xc] sm:$0x1]
    %v160 = vld [vmem:[#allocation2 + $0xd] sm:$0x1]
    %v161 = vmul.f32 %v38, 0.5
    %v162 = vlaneseq
    %v163 = vshrl.u32 %v162, 7
    %v164 = vsub.s32 0, %v163
    %v165 = vrot.slane %v160, %v164
    %v166 = vmul.f32 %v165, %v161
    %v167 = vlaneseq
    %v168 = vshrl.u32 %v167, 7
    %v169 = vsub.s32 0, %v168
    %v170 = vrot.slane %v159, %v169
    %v171 = vadd.f32 %v170, %v166
    %v172 = vmax.f32 %v171, 0.0
    %v173 = vmin.f32 %v172, 1.0
    %vm174 = vcmask 386048
    %175 = vst.msk [vmem:[#allocation9] sm:$0x3] %vm174, %v173
    %v176 = vld [vmem:[#allocation2 + $0xe] sm:$0x1]
    %v177 = vld [vmem:[#allocation2 + $0xf] sm:$0x1]
    %v178 = vlaneseq
    %v179 = vshrl.u32 %v178, 7
    %v180 = vsub.s32 0, %v179
    %v181 = vrot.slane %v177, %v180
    %v182 = vmul.f32 %v181, %v161
    %v183 = vlaneseq
    %v184 = vshrl.u32 %v183, 7
    %v185 = vsub.s32 0, %v184
    %v186 = vrot.slane %v176, %v185
    %v187 = vadd.f32 %v186, %v182
    %v188 = vmax.f32 %v187, 0.0
    %v189 = vmin.f32 %v188, 1.0
    %190 = vst.msk [vmem:[#allocation11] sm:$0x3] %vm174, %v189
    %v191 = vld [vmem:[#allocation2 + $0x10] sm:$0x1]
    %v192 = vld [vmem:[#allocation2 + $0x11] sm:$0x1]
    %v193 = vmul.f32 %v192, %v38
    %v194 = vadd.f32 %v191, %v193
    %v195 = vmax.f32 %v194, 0.0
    %v196 = vmin.f32 %v195, 1.0
    %vm197 = vcmask 188416
    %198 = vst.msk [vmem:[#allocation12] sm:$0x1] %vm197, %v196
    // Predicated region
    $region10: #{tpu_custom_call.1} parent=1 // pred_check
      _
    $region11: #{tpu_custom_call.1} parent=1 // pred_check_branch
      %200 = sbr.rel (0) target = $region13
    $region12: #{tpu_custom_call.1} parent=1 // pred_region
      %s202 = ssub.s32 768, 768
      %203 = vsyncadd [#allocation4], %s202
      %s204 = sshll.u32 [#allocation5], 4
      %s205 = int_to_ptr.vmem [resolvable:$true] %s204
      %210 = dma.vmem_to_hbm [thread:$0]  %s205, 768, %s1, [#allocation4], 384, 384, 24
    $region13: #{tpu_custom_call.1} parent=1 // pred_fallthru
      _
    // Predicated region
    $region14: #{tpu_custom_call.1} parent=1 // pred_check
      _
    $region15: #{tpu_custom_call.1} parent=1 // pred_check_branch
      %212 = sbr.rel (0) target = $region17
    $region16: #{tpu_custom_call.1} parent=1 // pred_region
      %s214 = ssub.s32 256, 256
      %215 = vsyncadd [#allocation7], %s214
      %s217 = sshll.u32 [#allocation6], 4
      %s218 = int_to_ptr.vmem [resolvable:$true] %s217
      %220 = dma.vmem_to_hbm [thread:$0]  %s218, 256, %s2, [#allocation7]
    $region17: #{tpu_custom_call.1} parent=1 // pred_fallthru
      _
    // Predicated region
    $region18: #{tpu_custom_call.1} parent=1 // pred_check
      _
    $region19: #{tpu_custom_call.1} parent=1 // pred_check_branch
      %222 = sbr.rel (0) target = $region21
    $region20: #{tpu_custom_call.1} parent=1 // pred_region
      %s224 = ssub.s32 64, 64
      %225 = vsyncadd [#allocation7], %s224
      %s227 = sshll.u32 [#allocation8], 4
      %s228 = int_to_ptr.vmem [resolvable:$true] %s227
      %230 = dma.vmem_to_hbm [thread:$0]  %s228, 64, %s3, [#allocation7]
    $region21: #{tpu_custom_call.1} parent=1 // pred_fallthru
      _
    // Predicated region
    $region22: #{tpu_custom_call.1} parent=1 // pred_check
      _
    $region23: #{tpu_custom_call.1} parent=1 // pred_check_branch
      %232 = sbr.rel (0) target = $region25
    $region24: #{tpu_custom_call.1} parent=1 // pred_region
      %s234 = ssub.s32 32, 32
      %235 = vsyncadd [#allocation10], %s234
      %s237 = sshll.u32 [#allocation9], 4
      %s238 = int_to_ptr.vmem [resolvable:$true] %s237
      %240 = dma.vmem_to_hbm [thread:$0]  %s238, 32, %s4, [#allocation10]
    $region25: #{tpu_custom_call.1} parent=1 // pred_fallthru
      _
    // Predicated region
    $region26: #{tpu_custom_call.1} parent=1 // pred_check
      _
    $region27: #{tpu_custom_call.1} parent=1 // pred_check_branch
      %242 = sbr.rel (0) target = $region29
    $region28: #{tpu_custom_call.1} parent=1 // pred_region
      %s244 = ssub.s32 32, 32
      %245 = vsyncadd [#allocation10], %s244
      %s247 = sshll.u32 [#allocation11], 4
      %s248 = int_to_ptr.vmem [resolvable:$true] %s247
      %250 = dma.vmem_to_hbm [thread:$0]  %s248, 32, %s5, [#allocation10]
    $region29: #{tpu_custom_call.1} parent=1 // pred_fallthru
      _
    // Predicated region
    $region30: #{tpu_custom_call.1} parent=1 // pred_check
      _
    $region31: #{tpu_custom_call.1} parent=1 // pred_check_branch
      %252 = sbr.rel (0) target = $region33
    $region32: #{tpu_custom_call.1} parent=1 // pred_region
      %s254 = ssub.s32 16, 16
      %255 = vsyncadd [#allocation13], %s254
      %s257 = sshll.u32 [#allocation12], 4
      %s258 = int_to_ptr.vmem [resolvable:$true] %s257
      %260 = dma.vmem_to_hbm [thread:$0]  %s258, 16, %s6, [#allocation13]
    $region33: #{tpu_custom_call.1} parent=1 // pred_fallthru
      _
    // Predicated region
    $region34: #{tpu_custom_call.1} parent=1 // pred_check
      _
    $region35: #{tpu_custom_call.1} parent=1 // pred_check_branch
      %262 = sbr.rel (0) target = $region37
    $region36: #{tpu_custom_call.1} parent=1 // pred_region
      %263 = dma.done [#allocation4], 768
    $region37: #{tpu_custom_call.1} parent=1 // pred_fallthru
      _
    // Predicated region
    $region38: #{tpu_custom_call.1} parent=1 // pred_check
      _
    $region39: #{tpu_custom_call.1} parent=1 // pred_check_branch
      %265 = sbr.rel (0) target = $region41
    $region40: #{tpu_custom_call.1} parent=1 // pred_region
      %266 = dma.done [#allocation7], 256
    $region41: #{tpu_custom_call.1} parent=1 // pred_fallthru
      _
    // Predicated region
    $region42: #{tpu_custom_call.1} parent=1 // pred_check
      _
    $region43: #{tpu_custom_call.1} parent=1 // pred_check_branch
      %268 = sbr.rel (0) target = $region45
    $region44: #{tpu_custom_call.1} parent=1 // pred_region
      %269 = dma.done [#allocation7], 64
    $region45: #{tpu_custom_call.1} parent=1 // pred_fallthru
      _
    // Predicated region
    $region46: #{tpu_custom_call.1} parent=1 // pred_check
      _
    $region47: #{tpu_custom_call.1} parent=1 // pred_check_branch
      %271 = sbr.rel (0) target = $region49
    $region48: #{tpu_custom_call.1} parent=1 // pred_region
      %272 = dma.done [#allocation10], 32
    $region49: #{tpu_custom_call.1} parent=1 // pred_fallthru
      _
    // Predicated region
    $region50: #{tpu_custom_call.1} parent=1 // pred_check
      _
    $region51: #{tpu_custom_call.1} parent=1 // pred_check_branch
      %274 = sbr.rel (0) target = $region53
    $region52: #{tpu_custom_call.1} parent=1 // pred_region
      %275 = dma.done [#allocation10], 32
    $region53: #{tpu_custom_call.1} parent=1 // pred_fallthru
      _
    // Predicated region
    $region54: #{tpu_custom_call.1} parent=1 // pred_check
      _
    $region55: #{tpu_custom_call.1} parent=1 // pred_check_branch
      %277 = sbr.rel (0) target = $region57
    $region56: #{tpu_custom_call.1} parent=1 // pred_region
      %278 = dma.done [#allocation13], 16
    $region57: #{tpu_custom_call.1} parent=1 // pred_fallthru
      _
    %279 = vsyncpa [#allocation3], 1
    %280 = vsyncpa [#allocation4], 1
    %281 = vsyncpa [#allocation7], 1
    %282 = vsyncpa [#allocation10], 1
    %283 = vsyncpa [#allocation13], 1

</llo_original>
